<compile_context>
chip_gen: v7x
topology: tpu7x:2x2x1
jax: 0.10.0
libtpu: 0.0.40
codegen_flags: <defaults>
</compile_context>

<pallas_src>
import functools

import jax
import jax.numpy as jnp
from jax.experimental import pallas as pl
from jax.experimental.pallas import tpu as pltpu

# ---- model dims (small, consistent with LlamaMLP + split=8) ----
B = 2          # batch
S = 64         # sequence length (must be divisible by SPLIT)
H = 128        # hidden_size
I = 256        # intermediate_size
SPLIT = 8      # SequenceWarpper split (semantic only; collapsed on TPU)


def _llama_mlp_kernel(x_ref, wgu_ref, wd_ref, o_ref):
    """Full LlamaMLP on a [tm, H] row-block (rows = flattened batch*seq)."""
    x = x_ref[...]            # (tm, H)   bf16
    wgu = wgu_ref[...]        # (H, 2I)   bf16  (gate | up fused)
    wd = wd_ref[...]          # (I, H)    bf16

    # Fused gate_proj + up_proj: one M x (2I) matmul on the MXU, f32 accumulate.
    gu = jnp.dot(x, wgu, preferred_element_type=jnp.float32)   # (tm, 2I) f32
    gate = gu[:, :I]          # static, 128-aligned slices -> no relayout
    up = gu[:, I:]

    # SiLU(gate) * up in f32 (sigmoid on EUP, muls on VPU; v5e lacks bf16 VPU/EUP).
    h = (gate * jax.nn.sigmoid(gate)) * up                     # (tm, I) f32

    # down_proj on the MXU (bf16 inputs, f32 accumulate).
    out = jnp.dot(h.astype(wd.dtype), wd, preferred_element_type=jnp.float32)
    o_ref[...] = out.astype(o_ref.dtype)                       # (tm, H)


@functools.partial(jax.jit, static_argnames=("m_blocks",))
def tp_sequence_parallel_mlp(x, wg, wu, wd, *, m_blocks=1):
    """Forward of TpSequenceParallel(LlamaMLP).

    m_blocks=1 is best on v5e/v6e (single TensorCore). On v7x, m_blocks=2 with
    the "parallel" grid axis shards the row-block across both TensorCores.
    """
    b, s, h = x.shape
    assert h == H and s % SPLIT == 0
    M = b * s
    assert M % m_blocks == 0
    tm = M // m_blocks
    assert tm % 8 == 0  # sublane alignment for the (tm, H) blocks

    # Flatten rows and cast to MXU-native bf16; fuse gate/up weights.
    x2 = x.reshape(M, h).astype(jnp.bfloat16)
    wgu = jnp.concatenate([wg, wu], axis=1).astype(jnp.bfloat16)   # (H, 2I)
    wd_b = wd.astype(jnp.bfloat16)                                 # (I, H)

    out = pl.pallas_call(
        _llama_mlp_kernel,
        out_shape=jax.ShapeDtypeStruct((M, h), x.dtype),
        grid=(m_blocks,),
        in_specs=[
            pl.BlockSpec((tm, H), lambda i: (i, 0)),       # x row-block i
            pl.BlockSpec((H, 2 * I), lambda i: (0, 0)),    # fused gate|up weight
            pl.BlockSpec((I, H), lambda i: (0, 0)),        # down_proj weight
        ],
        out_specs=pl.BlockSpec((tm, H), lambda i: (i, 0)),
        compiler_params=pltpu.CompilerParams(
            dimension_semantics=("parallel",),
        ),
    )(x2, wgu, wd_b)

    return out.reshape(b, s, h)


def _reference_f32(x, wg, wu, wd):
    """Pure f32 reference (matches the original PyTorch module math)."""
    gate = jnp.einsum('bsh,hi->bsi', x, wg)
    up = jnp.einsum('bsh,hi->bsi', x, wu)
    h = gate * jax.nn.sigmoid(gate) * up
    return jnp.einsum('bsi,ih->bsh', h, wd)


def _reference_bf16(x, wg, wu, wd):
    """Reference replicating the kernel's bf16-input / f32-accumulate arithmetic."""
    xb = x.astype(jnp.bfloat16).astype(jnp.float32)
    wgb = wg.astype(jnp.bfloat16).astype(jnp.float32)
    wub = wu.astype(jnp.bfloat16).astype(jnp.float32)
    wdb = wd.astype(jnp.bfloat16).astype(jnp.float32)
    gate = jnp.einsum('bsh,hi->bsi', xb, wgb)
    up = jnp.einsum('bsh,hi->bsi', xb, wub)
    h = gate * jax.nn.sigmoid(gate) * up
    hb = h.astype(jnp.bfloat16).astype(jnp.float32)
    return jnp.einsum('bsi,ih->bsh', hb, wdb)


if __name__ == "__main__":
    key = jax.random.PRNGKey(0)
    kx, kg, ku, kd = jax.random.split(key, 4)

    # Deterministic synthetic parameters (LlamaMLP: gate/up/down bias-free
    # linears, stored here pre-transposed for x @ W).
    x = jax.random.normal(kx, (B, S, H), dtype=jnp.float32)
    wg = jax.random.normal(kg, (H, I), dtype=jnp.float32) * 0.02
    wu = jax.random.normal(ku, (H, I), dtype=jnp.float32) * 0.02
    wd = jax.random.normal(kd, (I, H), dtype=jnp.float32) * 0.02

    out = tp_sequence_parallel_mlp(x, wg, wu, wd)
    jax.block_until_ready(out)
    assert out.shape == (B, S, H)

    # Tight check against a reference that mirrors the kernel's bf16/f32 mix.
    ref_b = _reference_bf16(x, wg, wu, wd)
    assert jnp.allclose(out, ref_b, atol=2e-3, rtol=2e-3), "mismatch vs bf16 reference"

    # Looser sanity check against the pure-f32 module semantics.
    ref_f = _reference_f32(x, wg, wu, wd)
    assert jnp.allclose(out, ref_f, atol=1e-2, rtol=1e-2), "mismatch vs f32 reference"

    print("KERNEL_OK")
</pallas_src>

<mosaic_0001>
module attributes {stable_mosaic.version = 11 : i64} {
  func.func @_llama_mlp_kernel(%arg0: i32, %arg1: memref<128x128xbf16, #tpu.memory_space<vmem>>, %arg2: memref<128x512xbf16, #tpu.memory_space<vmem>>, %arg3: memref<256x128xbf16, #tpu.memory_space<vmem>>, %arg4: memref<128x128xf32, #tpu.memory_space<vmem>>) attributes {dimension_semantics = [#tpu.dimension_semantics<parallel>], iteration_bounds = array<i64: 1>, scalar_prefetch = 0 : i64, scratch_operands = 0 : i64, tpu.core_type = #tpu.core_type<tc>, window_params = [{transform_indices = @transform_0, window_bounds = array<i64: 128, 128>}, {pipeline_mode = #tpu.pipeline_mode<synchronous>, transform_indices = @transform_1, window_bounds = array<i64: 128, 512>}, {pipeline_mode = #tpu.pipeline_mode<synchronous>, transform_indices = @transform_2, window_bounds = array<i64: 256, 128>}, {transform_indices = @transform_3, window_bounds = array<i64: 128, 128>}]} {
    %c0 = arith.constant 0 : index
    %c0_0 = arith.constant 0 : index
    %0 = vector.load %arg1[%c0, %c0_0] : memref<128x128xbf16, #tpu.memory_space<vmem>>, vector<128x128xbf16>
    %c0_1 = arith.constant 0 : index
    %c0_2 = arith.constant 0 : index
    %1 = vector.load %arg2[%c0_1, %c0_2] : memref<128x512xbf16, #tpu.memory_space<vmem>>, vector<128x512xbf16>
    %c0_3 = arith.constant 0 : index
    %c0_4 = arith.constant 0 : index
    %2 = vector.load %arg3[%c0_3, %c0_4] : memref<256x128xbf16, #tpu.memory_space<vmem>>, vector<256x128xbf16>
    %cst = arith.constant dense<0.000000e+00> : vector<128x512xf32>
    %3 = tpu.matmul %0, %1, %cst {dimension_numbers = #tpu.dot_dimension_numbers<[1], [0], [0], [1], [0, 0, 1, 1], [], []>} : vector<128x128xbf16>, vector<128x512xbf16>, vector<128x512xf32> -> vector<128x512xf32>
    %4 = vector.extract_strided_slice %3 {offsets = [0, 0], sizes = [128, 256], strides = [1, 1]} : vector<128x512xf32> to vector<128x256xf32>
    %5 = vector.extract_strided_slice %3 {offsets = [0, 256], sizes = [128, 256], strides = [1, 1]} : vector<128x512xf32> to vector<128x256xf32>
    %6 = arith.negf %4 : vector<128x256xf32>
    %7 = math.exp %6 : vector<128x256xf32>
    %cst_5 = arith.constant 1.000000e+00 : f32
    %8 = vector.broadcast %cst_5 : f32 to vector<128x256xf32>
    %9 = arith.addf %8, %7 : vector<128x256xf32>
    %10 = arith.divf %8, %9 : vector<128x256xf32>
    %11 = arith.mulf %4, %10 : vector<128x256xf32>
    %12 = arith.mulf %11, %5 : vector<128x256xf32>
    %13 = arith.truncf %12 : vector<128x256xf32> to vector<128x256xbf16>
    %cst_6 = arith.constant dense<0.000000e+00> : vector<128x128xf32>
    %14 = tpu.matmul %13, %2, %cst_6 {dimension_numbers = #tpu.dot_dimension_numbers<[1], [0], [0], [1], [0, 0, 1, 1], [], []>} : vector<128x256xbf16>, vector<256x128xbf16>, vector<128x128xf32> -> vector<128x128xf32>
    %c0_7 = arith.constant 0 : index
    %c0_8 = arith.constant 0 : index
    %15 = vector.load %arg4[%c0_7, %c0_8] : memref<128x128xf32, #tpu.memory_space<vmem>>, vector<128x128xf32>
    tpu.vector_store %arg4[%c0_7, %c0_8], %14 {strides = array<i32>} : memref<128x128xf32, #tpu.memory_space<vmem>>, vector<128x128xf32>,
    return
  }
  func.func @transform_0(%arg0: i32) -> (i32, i32) {
    %c0_i32 = arith.constant 0 : i32
    %c0_i32_0 = arith.constant 0 : i32
    return %arg0, %c0_i32 : i32, i32
  }
  func.func @transform_1(%arg0: i32) -> (i32, i32) {
    %c0_i32 = arith.constant 0 : i32
    %c0_i32_0 = arith.constant 0 : i32
    %c0_i32_1 = arith.constant 0 : i32
    return %c0_i32, %c0_i32_0 : i32, i32
  }
  func.func @transform_2(%arg0: i32) -> (i32, i32) {
    %c0_i32 = arith.constant 0 : i32
    %c0_i32_0 = arith.constant 0 : i32
    %c0_i32_1 = arith.constant 0 : i32
    return %c0_i32, %c0_i32_0 : i32, i32
  }
  func.func @transform_3(%arg0: i32) -> (i32, i32) {
    %c0_i32 = arith.constant 0 : i32
    %c0_i32_0 = arith.constant 0 : i32
    return %arg0, %c0_i32 : i32, i32
  }
}

</mosaic_0001>

<llo_original>
// kernel: tp_sequence_parallel_mlp.1
$region0: #{tp_sequence_parallel_mlp.1}
  #allocation0 [shape = 'u32[]', space=smem, size = 0x4, offset = 0x4, fixed_abs, tag = 'smem constant byte address 0x4 - core index']
  #allocation1 [shape = 'u32[144,128]{1,0:T(1,128)}', space=vmem, size = 0x12000, scoped, tag = 'internal scratch']
  %s0 = inlined_call_operand.vmem [shape: bf16[128,128], index: 0, kind: input, shape index: {}]
  %s1 = inlined_call_operand.vmem [shape: bf16[128,512], index: 1, kind: input, shape index: {}]
  %s2 = inlined_call_operand.vmem [shape: bf16[256,128], index: 2, kind: input, shape index: {}]
  %s3 = inlined_call_operand.hbm [shape: f32[128,128], index: 3, kind: output, shape index: {}]
  %s4 = sld [smem:[#allocation0]]
  $region22: #{tp_sequence_parallel_mlp.1} parent=0
    _
  %s6 = ssub.s32 1, %s4
  %s7 = scalar_select 0, %s6, %s4
  $region1: #{tp_sequence_parallel_mlp.1} parent=0
    #allocation2 [shape = 'u8[65536]{0}', space=vmem, size = 0x10000, scoped, tag = 'output window, operand 0, single buffered']
    #allocation3 [shape = 's32[1]{0}', space=sflag, size = 0x4, scoped, tag = 'scoped memory for tp_sequence_parallel_mlp.1']
    %8 = vsyncpa [#allocation3], 0
    // Predicated region
    $region2: #{tp_sequence_parallel_mlp.1} parent=1 // pred_check
      _
    $region3: #{tp_sequence_parallel_mlp.1} parent=1 // pred_check_branch
      %10 = sbr.rel (0) target = $region5
    $region4: #{tp_sequence_parallel_mlp.1} parent=1 // pred_region
      _
    $region5: #{tp_sequence_parallel_mlp.1} parent=1 // pred_fallthru
      _
    // Predicated region
    $region6: #{tp_sequence_parallel_mlp.1} parent=1 // pred_check
      _
    $region7: #{tp_sequence_parallel_mlp.1} parent=1 // pred_check_branch
      %12 = sbr.rel (0) target = $region9
    $region8: #{tp_sequence_parallel_mlp.1} parent=1 // pred_region
      _
    $region9: #{tp_sequence_parallel_mlp.1} parent=1 // pred_fallthru
      _
    // Predicated region
    $region10: #{tp_sequence_parallel_mlp.1} parent=1 // pred_check
      _
    $region11: #{tp_sequence_parallel_mlp.1} parent=1 // pred_check_branch
      %14 = sbr.rel (0) target = $region13
    $region12: #{tp_sequence_parallel_mlp.1} parent=1 // pred_region
      _
    $region13: #{tp_sequence_parallel_mlp.1} parent=1 // pred_fallthru
      _
    %v16 = vld [vmem:[%s0] sm:$0xf]
    %v17 = vld [vmem:[%s0 + $0x4] sm:$0xf]
    %v18 = vld [vmem:[%s0 + $0x8] sm:$0xf]
    %v19 = vld [vmem:[%s0 + $0xc] sm:$0xf]
    %v20 = vld [vmem:[%s0 + $0x10] sm:$0xf]
    %v21 = vld [vmem:[%s0 + $0x14] sm:$0xf]
    %v22 = vld [vmem:[%s0 + $0x18] sm:$0xf]
    %v23 = vld [vmem:[%s0 + $0x1c] sm:$0xf]
    %v24 = vld [vmem:[%s0 + $0x20] sm:$0xf]
    %v25 = vld [vmem:[%s0 + $0x24] sm:$0xf]
    %v26 = vld [vmem:[%s0 + $0x28] sm:$0xf]
    %v27 = vld [vmem:[%s0 + $0x2c] sm:$0xf]
    %v28 = vld [vmem:[%s0 + $0x30] sm:$0xf]
    %v29 = vld [vmem:[%s0 + $0x34] sm:$0xf]
    %v30 = vld [vmem:[%s0 + $0x38] sm:$0xf]
    %v31 = vld [vmem:[%s0 + $0x3c] sm:$0xf]
    %v32 = vld [vmem:[%s1] sm:$0xff]
    %v33 = vld [vmem:[%s1 + $0x8] sm:$0xff]
    %v34 = vld [vmem:[%s1 + $0x10] sm:$0xff]
    %v35 = vld [vmem:[%s1 + $0x18] sm:$0xff]
    %v36 = vld [vmem:[%s1 + $0x20] sm:$0xff]
    %v37 = vld [vmem:[%s1 + $0x28] sm:$0xff]
    %v38 = vld [vmem:[%s1 + $0x30] sm:$0xff]
    %v39 = vld [vmem:[%s1 + $0x38] sm:$0xff]
    %v40 = vld [vmem:[%s1 + $0x40] sm:$0xff]
    %v41 = vld [vmem:[%s1 + $0x48] sm:$0xff]
    %v42 = vld [vmem:[%s1 + $0x50] sm:$0xff]
    %v43 = vld [vmem:[%s1 + $0x58] sm:$0xff]
    %v44 = vld [vmem:[%s1 + $0x60] sm:$0xff]
    %v45 = vld [vmem:[%s1 + $0x68] sm:$0xff]
    %v46 = vld [vmem:[%s1 + $0x70] sm:$0xff]
    %v47 = vld [vmem:[%s1 + $0x78] sm:$0xff]
    %v48 = vld [vmem:[%s1 + $0x80] sm:$0xff]
    %v49 = vld [vmem:[%s1 + $0x88] sm:$0xff]
    %v50 = vld [vmem:[%s1 + $0x90] sm:$0xff]
    %v51 = vld [vmem:[%s1 + $0x98] sm:$0xff]
    %v52 = vld [vmem:[%s1 + $0xa0] sm:$0xff]
    %v53 = vld [vmem:[%s1 + $0xa8] sm:$0xff]
    %v54 = vld [vmem:[%s1 + $0xb0] sm:$0xff]
    %v55 = vld [vmem:[%s1 + $0xb8] sm:$0xff]
    %v56 = vld [vmem:[%s1 + $0xc0] sm:$0xff]
    %v57 = vld [vmem:[%s1 + $0xc8] sm:$0xff]
    %v58 = vld [vmem:[%s1 + $0xd0] sm:$0xff]
    %v59 = vld [vmem:[%s1 + $0xd8] sm:$0xff]
    %v60 = vld [vmem:[%s1 + $0xe0] sm:$0xff]
    %v61 = vld [vmem:[%s1 + $0xe8] sm:$0xff]
    %v62 = vld [vmem:[%s1 + $0xf0] sm:$0xff]
    %v63 = vld [vmem:[%s1 + $0xf8] sm:$0xff]
    %v64 = vld [vmem:[%s2] sm:$0xf]
    %v65 = vld [vmem:[%s2 + $0x4] sm:$0xf]
    %v66 = vld [vmem:[%s2 + $0x8] sm:$0xf]
    %v67 = vld [vmem:[%s2 + $0xc] sm:$0xf]
    %v68 = vld [vmem:[%s2 + $0x10] sm:$0xf]
    %v69 = vld [vmem:[%s2 + $0x14] sm:$0xf]
    %v70 = vld [vmem:[%s2 + $0x18] sm:$0xf]
    %v71 = vld [vmem:[%s2 + $0x1c] sm:$0xf]
    %v72 = vld [vmem:[%s2 + $0x20] sm:$0xf]
    %v73 = vld [vmem:[%s2 + $0x24] sm:$0xf]
    %v74 = vld [vmem:[%s2 + $0x28] sm:$0xf]
    %v75 = vld [vmem:[%s2 + $0x2c] sm:$0xf]
    %v76 = vld [vmem:[%s2 + $0x30] sm:$0xf]
    %v77 = vld [vmem:[%s2 + $0x34] sm:$0xf]
    %v78 = vld [vmem:[%s2 + $0x38] sm:$0xf]
    %v79 = vld [vmem:[%s2 + $0x3c] sm:$0xf]
    %v80 = vld [vmem:[%s2 + $0x40] sm:$0xf]
    %v81 = vld [vmem:[%s2 + $0x44] sm:$0xf]
    %v82 = vld [vmem:[%s2 + $0x48] sm:$0xf]
    %v83 = vld [vmem:[%s2 + $0x4c] sm:$0xf]
    %v84 = vld [vmem:[%s2 + $0x50] sm:$0xf]
    %v85 = vld [vmem:[%s2 + $0x54] sm:$0xf]
    %v86 = vld [vmem:[%s2 + $0x58] sm:$0xf]
    %v87 = vld [vmem:[%s2 + $0x5c] sm:$0xf]
    %v88 = vld [vmem:[%s2 + $0x60] sm:$0xf]
    %v89 = vld [vmem:[%s2 + $0x64] sm:$0xf]
    %v90 = vld [vmem:[%s2 + $0x68] sm:$0xf]
    %v91 = vld [vmem:[%s2 + $0x6c] sm:$0xf]
    %v92 = vld [vmem:[%s2 + $0x70] sm:$0xf]
    %v93 = vld [vmem:[%s2 + $0x74] sm:$0xf]
    %v94 = vld [vmem:[%s2 + $0x78] sm:$0xf]
    %v95 = vld [vmem:[%s2 + $0x7c] sm:$0xf]
    %v112 = vunpack.c.l.b16 %v16
    %v113 = vunpack.c.l.b16 %v17
    %v114 = vunpack.c.l.b16 %v18
    %v115 = vunpack.c.l.b16 %v19
    %v116 = vunpack.c.l.b16 %v20
    %v117 = vunpack.c.l.b16 %v21
    %v118 = vunpack.c.l.b16 %v22
    %v119 = vunpack.c.l.b16 %v23
    %v120 = vunpack.c.l.b16 %v24
    %v121 = vunpack.c.l.b16 %v25
    %v122 = vunpack.c.l.b16 %v26
    %v123 = vunpack.c.l.b16 %v27
    %v124 = vunpack.c.l.b16 %v28
    %v125 = vunpack.c.l.b16 %v29
    %v126 = vunpack.c.l.b16 %v30
    %v127 = vunpack.c.l.b16 %v31
    %v128 = vpack.c.b16 %v113, %v112
    %v129 = vpack.c.b16 %v115, %v114
    %v130 = vpack.c.b16 %v117, %v116
    %v131 = vpack.c.b16 %v119, %v118
    %v132 = vpack.c.b16 %v121, %v120
    %v133 = vpack.c.b16 %v123, %v122
    %v134 = vpack.c.b16 %v125, %v124
    %v135 = vpack.c.b16 %v127, %v126
    %v176 = vunpack.c.l.b16 %v32
    %v177 = vunpack.c.h.b16 %v32
    %v178 = vunpack.c.l.b16 %v33
    %v179 = vunpack.c.h.b16 %v33
    %v180 = vunpack.c.l.b16 %v34
    %v181 = vunpack.c.h.b16 %v34
    %v182 = vunpack.c.l.b16 %v35
    %v183 = vunpack.c.h.b16 %v35
    %v184 = vunpack.c.l.b16 %v36
    %v185 = vunpack.c.h.b16 %v36
    %v186 = vunpack.c.l.b16 %v37
    %v187 = vunpack.c.h.b16 %v37
    %v188 = vunpack.c.l.b16 %v38
    %v189 = vunpack.c.h.b16 %v38
    %v190 = vunpack.c.l.b16 %v39
    %v191 = vunpack.c.h.b16 %v39
    %v192 = vunpack.c.l.b16 %v40
    %v193 = vunpack.c.h.b16 %v40
    %v194 = vunpack.c.l.b16 %v41
    %v195 = vunpack.c.h.b16 %v41
    %v196 = vunpack.c.l.b16 %v42
    %v197 = vunpack.c.h.b16 %v42
    %v198 = vunpack.c.l.b16 %v43
    %v199 = vunpack.c.h.b16 %v43
    %v200 = vunpack.c.l.b16 %v44
    %v201 = vunpack.c.h.b16 %v44
    %v202 = vunpack.c.l.b16 %v45
    %v203 = vunpack.c.h.b16 %v45
    %v204 = vunpack.c.l.b16 %v46
    %v205 = vunpack.c.h.b16 %v46
    %v206 = vunpack.c.l.b16 %v47
    %v207 = vunpack.c.h.b16 %v47
    %v208 = vunpack.c.l.b16 %v48
    %v209 = vunpack.c.h.b16 %v48
    %v210 = vunpack.c.l.b16 %v49
    %v211 = vunpack.c.h.b16 %v49
    %v212 = vunpack.c.l.b16 %v50
    %v213 = vunpack.c.h.b16 %v50
    %v214 = vunpack.c.l.b16 %v51
    %v215 = vunpack.c.h.b16 %v51
    %v216 = vunpack.c.l.b16 %v52
    %v217 = vunpack.c.h.b16 %v52
    %v218 = vunpack.c.l.b16 %v53
    %v219 = vunpack.c.h.b16 %v53
    %v220 = vunpack.c.l.b16 %v54
    %v221 = vunpack.c.h.b16 %v54
    %v222 = vunpack.c.l.b16 %v55
    %v223 = vunpack.c.h.b16 %v55
    %v224 = vunpack.c.l.b16 %v56
    %v225 = vunpack.c.h.b16 %v56
    %v226 = vunpack.c.l.b16 %v57
    %v227 = vunpack.c.h.b16 %v57
    %v228 = vunpack.c.l.b16 %v58
    %v229 = vunpack.c.h.b16 %v58
    %v230 = vunpack.c.l.b16 %v59
    %v231 = vunpack.c.h.b16 %v59
    %v232 = vunpack.c.l.b16 %v60
    %v233 = vunpack.c.h.b16 %v60
    %v234 = vunpack.c.l.b16 %v61
    %v235 = vunpack.c.h.b16 %v61
    %v236 = vunpack.c.l.b16 %v62
    %v237 = vunpack.c.h.b16 %v62
    %v238 = vunpack.c.l.b16 %v63
    %v239 = vunpack.c.h.b16 %v63
    %v240 = vpack.c.b16 %v180, %v176
    %v241 = vpack.c.b16 %v181, %v177
    %v242 = vpack.c.b16 %v182, %v178
    %v243 = vpack.c.b16 %v183, %v179
    %v244 = vpack.c.b16 %v188, %v184
    %v245 = vpack.c.b16 %v189, %v185
    %v246 = vpack.c.b16 %v190, %v186
    %v247 = vpack.c.b16 %v191, %v187
    %v248 = vpack.c.b16 %v196, %v192
    %v249 = vpack.c.b16 %v197, %v193
    %v250 = vpack.c.b16 %v198, %v194
    %v251 = vpack.c.b16 %v199, %v195
    %v252 = vpack.c.b16 %v204, %v200
    %v253 = vpack.c.b16 %v205, %v201
    %v254 = vpack.c.b16 %v206, %v202
    %v255 = vpack.c.b16 %v207, %v203
    %v256 = vpack.c.b16 %v212, %v208
    %v257 = vpack.c.b16 %v213, %v209
    %v258 = vpack.c.b16 %v214, %v210
    %v259 = vpack.c.b16 %v215, %v211
    %v260 = vpack.c.b16 %v220, %v216
    %v261 = vpack.c.b16 %v221, %v217
    %v262 = vpack.c.b16 %v222, %v218
    %v263 = vpack.c.b16 %v223, %v219
    %v264 = vpack.c.b16 %v228, %v224
    %v265 = vpack.c.b16 %v229, %v225
    %v266 = vpack.c.b16 %v230, %v226
    %v267 = vpack.c.b16 %v231, %v227
    %v268 = vpack.c.b16 %v236, %v232
    %v269 = vpack.c.b16 %v237, %v233
    %v270 = vpack.c.b16 %v238, %v234
    %v271 = vpack.c.b16 %v239, %v235
    %304 = vmatprep.subr.bf16.mxu0 %v241
    %305 = vmatpush1.bf16.msra.mxu0 %v240
    %306 = vmatprep.subr.bf16.mxu0 %v245
    %307 = vmatpush1.bf16.msra.mxu0 %v244
    %308 = vmatprep.subr.bf16.mxu0 %v249
    %309 = vmatpush1.bf16.msra.mxu0 %v248
    %310 = vmatprep.subr.bf16.mxu0 %v253
    %311 = vmatpush1.bf16.msra.mxu0 %v252
    %312 = vmatprep.subr.bf16.mxu0 %v257
    %313 = vmatpush1.bf16.msra.mxu0 %v256
    %314 = vmatprep.subr.bf16.mxu0 %v261
    %315 = vmatpush1.bf16.msra.mxu0 %v260
    %316 = vmatprep.subr.bf16.mxu0 %v265
    %317 = vmatpush1.bf16.msra.mxu0 %v264
    %318 = vmatprep.subr.bf16.mxu0 %v269
    %319 = vmatpush1.bf16.msra.mxu0 %v268
    %320 = vmatprep.subr.bf16.mxu0 0
    %321 = vmatpush1.bf16.msra.mxu0 0
    %322 = vmatprep.subr.bf16.mxu0 0
    %323 = vmatpush1.bf16.msra.mxu0 0
    %324 = vmatprep.subr.bf16.mxu0 0
    %325 = vmatpush1.bf16.msra.mxu0 0
    %326 = vmatprep.subr.bf16.mxu0 0
    %327 = vmatpush1.bf16.msra.mxu0 0
    %328 = vmatprep.subr.bf16.mxu0 0
    %329 = vmatpush1.bf16.msra.mxu0 0
    %330 = vmatprep.subr.bf16.mxu0 0
    %331 = vmatpush1.bf16.msra.mxu0 0
    %332 = vmatprep.subr.bf16.mxu0 0
    %333 = vmatpush1.bf16.msra.mxu0 0
    %334 = vmatprep.subr.bf16.mxu0 0
    %335 = vmatpush1.bf16.msra.mxu0 0
    %336 = vmatprep.mubr.bf16.mxu0 0
    %337 = vmatmul.mubr.bf16.gmra.mrb[0].mxu0 %v128
    %v338 = vpop.f32.mrb[0].mxu0
    %v339 = vadd.f32 0.0, %v338
    %v340 = vpop.f32.mrb[0].mxu0
    %v341 = vadd.f32 0.0, %v340
    %v342 = vpop.f32.mrb[0].mxu0
    %v343 = vadd.f32 0.0, %v342
    %v344 = vpop.f32.mrb[0].mxu0
    %v345 = vadd.f32 0.0, %v344
    %346 = vmatprep.mubr.bf16.mxu0 0
    %347 = vmatmul.mubr.bf16.gmra.mrb[0].mxu0 %v129
    %v348 = vpop.f32.mrb[0].mxu0
    %v349 = vadd.f32 0.0, %v348
    %v350 = vpop.f32.mrb[0].mxu0
    %v351 = vadd.f32 0.0, %v350
    %v352 = vpop.f32.mrb[0].mxu0
    %v353 = vadd.f32 0.0, %v352
    %v354 = vpop.f32.mrb[0].mxu0
    %v355 = vadd.f32 0.0, %v354
    %356 = vmatprep.mubr.bf16.mxu0 0
    %357 = vmatmul.mubr.bf16.gmra.mrb[0].mxu0 %v130
    %v358 = vpop.f32.mrb[0].mxu0
    %v359 = vadd.f32 0.0, %v358
    %v360 = vpop.f32.mrb[0].mxu0
    %v361 = vadd.f32 0.0, %v360
    %v362 = vpop.f32.mrb[0].mxu0
    %v363 = vadd.f32 0.0, %v362
    %v364 = vpop.f32.mrb[0].mxu0
    %v365 = vadd.f32 0.0, %v364
    %366 = vmatprep.mubr.bf16.mxu0 0
    %367 = vmatmul.mubr.bf16.gmra.mrb[0].mxu0 %v131
    %v368 = vpop.f32.mrb[0].mxu0
    %v369 = vadd.f32 0.0, %v368
    %v370 = vpop.f32.mrb[0].mxu0
    %v371 = vadd.f32 0.0, %v370
    %v372 = vpop.f32.mrb[0].mxu0
    %v373 = vadd.f32 0.0, %v372
    %v374 = vpop.f32.mrb[0].mxu0
    %v375 = vadd.f32 0.0, %v374
    %376 = vmatprep.mubr.bf16.mxu0 0
    %377 = vmatmul.mubr.bf16.gmra.mrb[0].mxu0 %v132
    %v378 = vpop.f32.mrb[0].mxu0
    %v379 = vadd.f32 0.0, %v378
    %v380 = vpop.f32.mrb[0].mxu0
    %v381 = vadd.f32 0.0, %v380
    %v382 = vpop.f32.mrb[0].mxu0
    %v383 = vadd.f32 0.0, %v382
    %v384 = vpop.f32.mrb[0].mxu0
    %v385 = vadd.f32 0.0, %v384
    %386 = vmatprep.mubr.bf16.mxu0 0
    %387 = vmatmul.mubr.bf16.gmra.mrb[0].mxu0 %v133
    %v388 = vpop.f32.mrb[0].mxu0
    %v389 = vadd.f32 0.0, %v388
    %v390 = vpop.f32.mrb[0].mxu0
    %v391 = vadd.f32 0.0, %v390
    %v392 = vpop.f32.mrb[0].mxu0
    %v393 = vadd.f32 0.0, %v392
    %v394 = vpop.f32.mrb[0].mxu0
    %v395 = vadd.f32 0.0, %v394
    %396 = vmatprep.mubr.bf16.mxu0 0
    %397 = vmatmul.mubr.bf16.gmra.mrb[0].mxu0 %v134
    %v398 = vpop.f32.mrb[0].mxu0
    %v399 = vadd.f32 0.0, %v398
    %v400 = vpop.f32.mrb[0].mxu0
    %v401 = vadd.f32 0.0, %v400
    %v402 = vpop.f32.mrb[0].mxu0
    %v403 = vadd.f32 0.0, %v402
    %v404 = vpop.f32.mrb[0].mxu0
    %v405 = vadd.f32 0.0, %v404
    %406 = vmatprep.mubr.bf16.mxu0 0
    %407 = vmatmul.mubr.bf16.gmra.mrb[0].mxu0 %v135
    %v408 = vpop.f32.mrb[0].mxu0
    %v409 = vadd.f32 0.0, %v408
    %v410 = vpop.f32.mrb[0].mxu0
    %v411 = vadd.f32 0.0, %v410
    %v412 = vpop.f32.mrb[0].mxu0
    %v413 = vadd.f32 0.0, %v412
    %v414 = vpop.f32.mrb[0].mxu0
    %v415 = vadd.f32 0.0, %v414
    %416 = vdwg.mxu0
    %417 = vmatprep.subr.bf16.mxu0 %v243
    %418 = vmatpush1.bf16.msra.mxu0 %v242
    %419 = vmatprep.subr.bf16.mxu0 %v247
    %420 = vmatpush1.bf16.msra.mxu0 %v246
    %421 = vmatprep.subr.bf16.mxu0 %v251
    %422 = vmatpush1.bf16.msra.mxu0 %v250
    %423 = vmatprep.subr.bf16.mxu0 %v255
    %424 = vmatpush1.bf16.msra.mxu0 %v254
    %425 = vmatprep.subr.bf16.mxu0 %v259
    %426 = vmatpush1.bf16.msra.mxu0 %v258
    %427 = vmatprep.subr.bf16.mxu0 %v263
    %428 = vmatpush1.bf16.msra.mxu0 %v262
    %429 = vmatprep.subr.bf16.mxu0 %v267
    %430 = vmatpush1.bf16.msra.mxu0 %v266
    %431 = vmatprep.subr.bf16.mxu0 %v271
    %432 = vmatpush1.bf16.msra.mxu0 %v270
    %433 = vmatprep.subr.bf16.mxu0 0
    %434 = vmatpush1.bf16.msra.mxu0 0
    %435 = vmatprep.subr.bf16.mxu0 0
    %436 = vmatpush1.bf16.msra.mxu0 0
    %437 = vmatprep.subr.bf16.mxu0 0
    %438 = vmatpush1.bf16.msra.mxu0 0
    %439 = vmatprep.subr.bf16.mxu0 0
    %440 = vmatpush1.bf16.msra.mxu0 0
    %441 = vmatprep.subr.bf16.mxu0 0
    %442 = vmatpush1.bf16.msra.mxu0 0
    %443 = vmatprep.subr.bf16.mxu0 0
    %444 = vmatpush1.bf16.msra.mxu0 0
    %445 = vmatprep.subr.bf16.mxu0 0
    %446 = vmatpush1.bf16.msra.mxu0 0
    %447 = vmatprep.subr.bf16.mxu0 0
    %448 = vmatpush1.bf16.msra.mxu0 0
    %449 = vmatprep.mubr.bf16.mxu0 0
    %450 = vmatmul.mubr.bf16.gmra.mrb[0].mxu0 %v128
    %v451 = vpop.f32.mrb[0].mxu0
    %v452 = vadd.f32 0.0, %v451
    %v453 = vpop.f32.mrb[0].mxu0
    %v454 = vadd.f32 0.0, %v453
    %v455 = vpop.f32.mrb[0].mxu0
    %v456 = vadd.f32 0.0, %v455
    %v457 = vpop.f32.mrb[0].mxu0
    %v458 = vadd.f32 0.0, %v457
    %459 = vmatprep.mubr.bf16.mxu0 0
    %460 = vmatmul.mubr.bf16.gmra.mrb[0].mxu0 %v129
    %v461 = vpop.f32.mrb[0].mxu0
    %v462 = vadd.f32 0.0, %v461
    %v463 = vpop.f32.mrb[0].mxu0
    %v464 = vadd.f32 0.0, %v463
    %v465 = vpop.f32.mrb[0].mxu0
    %v466 = vadd.f32 0.0, %v465
    %v467 = vpop.f32.mrb[0].mxu0
    %v468 = vadd.f32 0.0, %v467
    %469 = vmatprep.mubr.bf16.mxu0 0
    %470 = vmatmul.mubr.bf16.gmra.mrb[0].mxu0 %v130
    %v471 = vpop.f32.mrb[0].mxu0
    %v472 = vadd.f32 0.0, %v471
    %v473 = vpop.f32.mrb[0].mxu0
    %v474 = vadd.f32 0.0, %v473
    %v475 = vpop.f32.mrb[0].mxu0
    %v476 = vadd.f32 0.0, %v475
    %v477 = vpop.f32.mrb[0].mxu0
    %v478 = vadd.f32 0.0, %v477
    %479 = vmatprep.mubr.bf16.mxu0 0
    %480 = vmatmul.mubr.bf16.gmra.mrb[0].mxu0 %v131
    %v481 = vpop.f32.mrb[0].mxu0
    %v482 = vadd.f32 0.0, %v481
    %v483 = vpop.f32.mrb[0].mxu0
    %v484 = vadd.f32 0.0, %v483
    %v485 = vpop.f32.mrb[0].mxu0
    %v486 = vadd.f32 0.0, %v485
    %v487 = vpop.f32.mrb[0].mxu0
    %v488 = vadd.f32 0.0, %v487
    %489 = vmatprep.mubr.bf16.mxu0 0
    %490 = vmatmul.mubr.bf16.gmra.mrb[0].mxu0 %v132
    %v491 = vpop.f32.mrb[0].mxu0
    %v492 = vadd.f32 0.0, %v491
    %v493 = vpop.f32.mrb[0].mxu0
    %v494 = vadd.f32 0.0, %v493
    %v495 = vpop.f32.mrb[0].mxu0
    %v496 = vadd.f32 0.0, %v495
    %v497 = vpop.f32.mrb[0].mxu0
    %v498 = vadd.f32 0.0, %v497
    %499 = vmatprep.mubr.bf16.mxu0 0
    %500 = vmatmul.mubr.bf16.gmra.mrb[0].mxu0 %v133
    %v501 = vpop.f32.mrb[0].mxu0
    %v502 = vadd.f32 0.0, %v501
    %v503 = vpop.f32.mrb[0].mxu0
    %v504 = vadd.f32 0.0, %v503
    %v505 = vpop.f32.mrb[0].mxu0
    %v506 = vadd.f32 0.0, %v505
    %v507 = vpop.f32.mrb[0].mxu0
    %v508 = vadd.f32 0.0, %v507
    %509 = vmatprep.mubr.bf16.mxu0 0
    %510 = vmatmul.mubr.bf16.gmra.mrb[0].mxu0 %v134
    %v511 = vpop.f32.mrb[0].mxu0
    %v512 = vadd.f32 0.0, %v511
    %v513 = vpop.f32.mrb[0].mxu0
    %v514 = vadd.f32 0.0, %v513
    %v515 = vpop.f32.mrb[0].mxu0
    %v516 = vadd.f32 0.0, %v515
    %v517 = vpop.f32.mrb[0].mxu0
    %v518 = vadd.f32 0.0, %v517
    %519 = vmatprep.mubr.bf16.mxu0 0
    %520 = vmatmul.mubr.bf16.gmra.mrb[0].mxu0 %v135
    %v521 = vpop.f32.mrb[0].mxu0
    %v522 = vadd.f32 0.0, %v521
    %v523 = vpop.f32.mrb[0].mxu0
    %v524 = vadd.f32 0.0, %v523
    %v525 = vpop.f32.mrb[0].mxu0
    %v526 = vadd.f32 0.0, %v525
    %v527 = vpop.f32.mrb[0].mxu0
    %v528 = vadd.f32 0.0, %v527
    %529 = vdwg.mxu0
    %v530 = vxor.u32 %v339, 2147483648
    %v531 = vxor.u32 %v341, 2147483648
    %v532 = vxor.u32 %v343, 2147483648
    %v533 = vxor.u32 %v345, 2147483648
    %v534 = vxor.u32 %v349, 2147483648
    %v535 = vxor.u32 %v351, 2147483648
    %v536 = vxor.u32 %v353, 2147483648
    %v537 = vxor.u32 %v355, 2147483648
    %v538 = vxor.u32 %v359, 2147483648
    %v539 = vxor.u32 %v361, 2147483648
    %v540 = vxor.u32 %v363, 2147483648
    %v541 = vxor.u32 %v365, 2147483648
    %v542 = vxor.u32 %v369, 2147483648
    %v543 = vxor.u32 %v371, 2147483648
    %v544 = vxor.u32 %v373, 2147483648
    %v545 = vxor.u32 %v375, 2147483648
    %v546 = vxor.u32 %v379, 2147483648
    %v547 = vxor.u32 %v381, 2147483648
    %v548 = vxor.u32 %v383, 2147483648
    %v549 = vxor.u32 %v385, 2147483648
    %v550 = vxor.u32 %v389, 2147483648
    %v551 = vxor.u32 %v391, 2147483648
    %v552 = vxor.u32 %v393, 2147483648
    %v553 = vxor.u32 %v395, 2147483648
    %v554 = vxor.u32 %v399, 2147483648
    %v555 = vxor.u32 %v401, 2147483648
    %v556 = vxor.u32 %v403, 2147483648
    %v557 = vxor.u32 %v405, 2147483648
    %v558 = vxor.u32 %v409, 2147483648
    %v559 = vxor.u32 %v411, 2147483648
    %v560 = vxor.u32 %v413, 2147483648
    %v561 = vxor.u32 %v415, 2147483648
    %v562 = vmul.f32 %v530, 1.442695
    %v563 = vpow.pop %v562
    %v564 = vmul.f32 %v531, 1.442695
    %v565 = vpow.pop %v564
    %v566 = vmul.f32 %v532, 1.442695
    %v567 = vpow.pop %v566
    %v568 = vmul.f32 %v533, 1.442695
    %v569 = vpow.pop %v568
    %v570 = vmul.f32 %v534, 1.442695
    %v571 = vpow.pop %v570
    %v572 = vmul.f32 %v535, 1.442695
    %v573 = vpow.pop %v572
    %v574 = vmul.f32 %v536, 1.442695
    %v575 = vpow.pop %v574
    %v576 = vmul.f32 %v537, 1.442695
    %v577 = vpow.pop %v576
    %v578 = vmul.f32 %v538, 1.442695
    %v579 = vpow.pop %v578
    %v580 = vmul.f32 %v539, 1.442695
    %v581 = vpow.pop %v580
    %v582 = vmul.f32 %v540, 1.442695
    %v583 = vpow.pop %v582
    %v584 = vmul.f32 %v541, 1.442695
    %v585 = vpow.pop %v584
    %v586 = vmul.f32 %v542, 1.442695
    %v587 = vpow.pop %v586
    %v588 = vmul.f32 %v543, 1.442695
    %v589 = vpow.pop %v588
    %v590 = vmul.f32 %v544, 1.442695
    %v591 = vpow.pop %v590
    %v592 = vmul.f32 %v545, 1.442695
    %v593 = vpow.pop %v592
    %v594 = vmul.f32 %v546, 1.442695
    %v595 = vpow.pop %v594
    %v596 = vmul.f32 %v547, 1.442695
    %v597 = vpow.pop %v596
    %v598 = vmul.f32 %v548, 1.442695
    %v599 = vpow.pop %v598
    %v600 = vmul.f32 %v549, 1.442695
    %v601 = vpow.pop %v600
    %v602 = vmul.f32 %v550, 1.442695
    %v603 = vpow.pop %v602
    %v604 = vmul.f32 %v551, 1.442695
    %v605 = vpow.pop %v604
    %v606 = vmul.f32 %v552, 1.442695
    %v607 = vpow.pop %v606
    %v608 = vmul.f32 %v553, 1.442695
    %v609 = vpow.pop %v608
    %v610 = vmul.f32 %v554, 1.442695
    %v611 = vpow.pop %v610
    %v612 = vmul.f32 %v555, 1.442695
    %v613 = vpow.pop %v612
    %v614 = vmul.f32 %v556, 1.442695
    %v615 = vpow.pop %v614
    %v616 = vmul.f32 %v557, 1.442695
    %v617 = vpow.pop %v616
    %v618 = vmul.f32 %v558, 1.442695
    %v619 = vpow.pop %v618
    %v620 = vmul.f32 %v559, 1.442695
    %v621 = vpow.pop %v620
    %v622 = vmul.f32 %v560, 1.442695
    %v623 = vpow.pop %v622
    %v624 = vmul.f32 %v561, 1.442695
    %v625 = vpow.pop %v624
    %v626 = vadd.f32 %v563, 1.0
    %v627 = vadd.f32 %v565, 1.0
    %v628 = vadd.f32 %v567, 1.0
    %v629 = vadd.f32 %v569, 1.0
    %v630 = vadd.f32 %v571, 1.0
    %v631 = vadd.f32 %v573, 1.0
    %v632 = vadd.f32 %v575, 1.0
    %v633 = vadd.f32 %v577, 1.0
    %v634 = vadd.f32 %v579, 1.0
    %v635 = vadd.f32 %v581, 1.0
    %v636 = vadd.f32 %v583, 1.0
    %v637 = vadd.f32 %v585, 1.0
    %v638 = vadd.f32 %v587, 1.0
    %v639 = vadd.f32 %v589, 1.0
    %v640 = vadd.f32 %v591, 1.0
    %v641 = vadd.f32 %v593, 1.0
    %v642 = vadd.f32 %v595, 1.0
    %v643 = vadd.f32 %v597, 1.0
    %v644 = vadd.f32 %v599, 1.0
    %v645 = vadd.f32 %v601, 1.0
    %v646 = vadd.f32 %v603, 1.0
    %v647 = vadd.f32 %v605, 1.0
    %v648 = vadd.f32 %v607, 1.0
    %v649 = vadd.f32 %v609, 1.0
    %v650 = vadd.f32 %v611, 1.0
    %v651 = vadd.f32 %v613, 1.0
    %v652 = vadd.f32 %v615, 1.0
    %v653 = vadd.f32 %v617, 1.0
    %v654 = vadd.f32 %v619, 1.0
    %v655 = vadd.f32 %v621, 1.0
    %v656 = vadd.f32 %v623, 1.0
    %v657 = vadd.f32 %v625, 1.0
    %v658 = vrcp.pop %v626
    %v659 = vmul.f32 1.0, %v658
    %v660 = vrcp.pop %v627
    %v661 = vmul.f32 1.0, %v660
    %v662 = vrcp.pop %v628
    %v663 = vmul.f32 1.0, %v662
    %v664 = vrcp.pop %v629
    %v665 = vmul.f32 1.0, %v664
    %v666 = vrcp.pop %v630
    %v667 = vmul.f32 1.0, %v666
    %v668 = vrcp.pop %v631
    %v669 = vmul.f32 1.0, %v668
    %v670 = vrcp.pop %v632
    %v671 = vmul.f32 1.0, %v670
    %v672 = vrcp.pop %v633
    %v673 = vmul.f32 1.0, %v672
    %v674 = vrcp.pop %v634
    %v675 = vmul.f32 1.0, %v674
    %v676 = vrcp.pop %v635
    %v677 = vmul.f32 1.0, %v676
    %v678 = vrcp.pop %v636
    %v679 = vmul.f32 1.0, %v678
    %v680 = vrcp.pop %v637
    %v681 = vmul.f32 1.0, %v680
    %v682 = vrcp.pop %v638
    %v683 = vmul.f32 1.0, %v682
    %v684 = vrcp.pop %v639
    %v685 = vmul.f32 1.0, %v684
    %v686 = vrcp.pop %v640
    %v687 = vmul.f32 1.0, %v686
    %v688 = vrcp.pop %v641
    %v689 = vmul.f32 1.0, %v688
    %v690 = vrcp.pop %v642
    %v691 = vmul.f32 1.0, %v690
    %v692 = vrcp.pop %v643
    %v693 = vmul.f32 1.0, %v692
    %v694 = vrcp.pop %v644
    %v695 = vmul.f32 1.0, %v694
    %v696 = vrcp.pop %v645
    %v697 = vmul.f32 1.0, %v696
    %v698 = vrcp.pop %v646
    %v699 = vmul.f32 1.0, %v698
    %v700 = vrcp.pop %v647
    %v701 = vmul.f32 1.0, %v700
    %v702 = vrcp.pop %v648
    %v703 = vmul.f32 1.0, %v702
    %v704 = vrcp.pop %v649
    %v705 = vmul.f32 1.0, %v704
    %v706 = vrcp.pop %v650
    %v707 = vmul.f32 1.0, %v706
    %v708 = vrcp.pop %v651
    %v709 = vmul.f32 1.0, %v708
    %v710 = vrcp.pop %v652
    %v711 = vmul.f32 1.0, %v710
    %v712 = vrcp.pop %v653
    %v713 = vmul.f32 1.0, %v712
    %v714 = vrcp.pop %v654
    %v715 = vmul.f32 1.0, %v714
    %v716 = vrcp.pop %v655
    %v717 = vmul.f32 1.0, %v716
    %v718 = vrcp.pop %v656
    %v719 = vmul.f32 1.0, %v718
    %v720 = vrcp.pop %v657
    %v721 = vmul.f32 1.0, %v720
    %v722 = vmul.f32 %v339, %v659
    %v723 = vmul.f32 %v341, %v661
    %v724 = vmul.f32 %v343, %v663
    %v725 = vmul.f32 %v345, %v665
    %v726 = vmul.f32 %v349, %v667
    %v727 = vmul.f32 %v351, %v669
    %v728 = vmul.f32 %v353, %v671
    %v729 = vmul.f32 %v355, %v673
    %v730 = vmul.f32 %v359, %v675
    %v731 = vmul.f32 %v361, %v677
    %v732 = vmul.f32 %v363, %v679
    %v733 = vmul.f32 %v365, %v681
    %v734 = vmul.f32 %v369, %v683
    %v735 = vmul.f32 %v371, %v685
    %v736 = vmul.f32 %v373, %v687
    %v737 = vmul.f32 %v375, %v689
    %v738 = vmul.f32 %v379, %v691
    %v739 = vmul.f32 %v381, %v693
    %v740 = vmul.f32 %v383, %v695
    %v741 = vmul.f32 %v385, %v697
    %v742 = vmul.f32 %v389, %v699
    %v743 = vmul.f32 %v391, %v701
    %v744 = vmul.f32 %v393, %v703
    %v745 = vmul.f32 %v395, %v705
    %v746 = vmul.f32 %v399, %v707
    %v747 = vmul.f32 %v401, %v709
    %v748 = vmul.f32 %v403, %v711
    %v749 = vmul.f32 %v405, %v713
    %v750 = vmul.f32 %v409, %v715
    %v751 = vmul.f32 %v411, %v717
    %v752 = vmul.f32 %v413, %v719
    %v753 = vmul.f32 %v415, %v721
    %v754 = vmul.f32 %v722, %v452
    %v755 = vmul.f32 %v723, %v454
    %v756 = vmul.f32 %v724, %v456
    %v757 = vmul.f32 %v725, %v458
    %v758 = vmul.f32 %v726, %v462
    %v759 = vmul.f32 %v727, %v464
    %v760 = vmul.f32 %v728, %v466
    %v761 = vmul.f32 %v729, %v468
    %v762 = vmul.f32 %v730, %v472
    %v763 = vmul.f32 %v731, %v474
    %v764 = vmul.f32 %v732, %v476
    %v765 = vmul.f32 %v733, %v478
    %v766 = vmul.f32 %v734, %v482
    %v767 = vmul.f32 %v735, %v484
    %v768 = vmul.f32 %v736, %v486
    %v769 = vmul.f32 %v737, %v488
    %v770 = vmul.f32 %v738, %v492
    %v771 = vmul.f32 %v739, %v494
    %v772 = vmul.f32 %v740, %v496
    %v773 = vmul.f32 %v741, %v498
    %v774 = vmul.f32 %v742, %v502
    %v775 = vmul.f32 %v743, %v504
    %v776 = vmul.f32 %v744, %v506
    %v777 = vmul.f32 %v745, %v508
    %v778 = vmul.f32 %v746, %v512
    %v779 = vmul.f32 %v747, %v514
    %v780 = vmul.f32 %v748, %v516
    %v781 = vmul.f32 %v749, %v518
    %v782 = vmul.f32 %v750, %v522
    %v783 = vmul.f32 %v751, %v524
    %v784 = vmul.f32 %v752, %v526
    %v785 = vmul.f32 %v753, %v528
    %v786 = vpack.c.bf16 %v756, %v754
    %v787 = vpack.c.bf16 %v757, %v755
    %v788 = vpack.c.bf16 %v760, %v758
    %v789 = vpack.c.bf16 %v761, %v759
    %v790 = vpack.c.bf16 %v764, %v762
    %v791 = vpack.c.bf16 %v765, %v763
    %v792 = vpack.c.bf16 %v768, %v766
    %v793 = vpack.c.bf16 %v769, %v767
    %v794 = vpack.c.bf16 %v772, %v770
    %v795 = vpack.c.bf16 %v773, %v771
    %v796 = vpack.c.bf16 %v776, %v774
    %v797 = vpack.c.bf16 %v777, %v775
    %v798 = vpack.c.bf16 %v780, %v778
    %v799 = vpack.c.bf16 %v781, %v779
    %v800 = vpack.c.bf16 %v784, %v782
    %v801 = vpack.c.bf16 %v785, %v783
    %v834 = vunpack.c.l.b16 %v64
    %v835 = vunpack.c.l.b16 %v65
    %v836 = vunpack.c.l.b16 %v66
    %v837 = vunpack.c.l.b16 %v67
    %v838 = vunpack.c.l.b16 %v68
    %v839 = vunpack.c.l.b16 %v69
    %v840 = vunpack.c.l.b16 %v70
    %v841 = vunpack.c.l.b16 %v71
    %v842 = vunpack.c.l.b16 %v72
    %v843 = vunpack.c.l.b16 %v73
    %v844 = vunpack.c.l.b16 %v74
    %v845 = vunpack.c.l.b16 %v75
    %v846 = vunpack.c.l.b16 %v76
    %v847 = vunpack.c.l.b16 %v77
    %v848 = vunpack.c.l.b16 %v78
    %v849 = vunpack.c.l.b16 %v79
    %v850 = vunpack.c.l.b16 %v80
    %v851 = vunpack.c.l.b16 %v81
    %v852 = vunpack.c.l.b16 %v82
    %v853 = vunpack.c.l.b16 %v83
    %v854 = vunpack.c.l.b16 %v84
    %v855 = vunpack.c.l.b16 %v85
    %v856 = vunpack.c.l.b16 %v86
    %v857 = vunpack.c.l.b16 %v87
    %v858 = vunpack.c.l.b16 %v88
    %v859 = vunpack.c.l.b16 %v89
    %v860 = vunpack.c.l.b16 %v90
    %v861 = vunpack.c.l.b16 %v91
    %v862 = vunpack.c.l.b16 %v92
    %v863 = vunpack.c.l.b16 %v93
    %v864 = vunpack.c.l.b16 %v94
    %v865 = vunpack.c.l.b16 %v95
    %v866 = vpack.c.b16 %v835, %v834
    %v867 = vpack.c.b16 %v837, %v836
    %v868 = vpack.c.b16 %v839, %v838
    %v869 = vpack.c.b16 %v841, %v840
    %v870 = vpack.c.b16 %v843, %v842
    %v871 = vpack.c.b16 %v845, %v844
    %v872 = vpack.c.b16 %v847, %v846
    %v873 = vpack.c.b16 %v849, %v848
    %v874 = vpack.c.b16 %v851, %v850
    %v875 = vpack.c.b16 %v853, %v852
    %v876 = vpack.c.b16 %v855, %v854
    %v877 = vpack.c.b16 %v857, %v856
    %v878 = vpack.c.b16 %v859, %v858
    %v879 = vpack.c.b16 %v861, %v860
    %v880 = vpack.c.b16 %v863, %v862
    %v881 = vpack.c.b16 %v865, %v864
    %898 = vmatprep.subr.bf16.mxu0 0
    %899 = vmatpush1.bf16.msra.mxu0 %v866
    %900 = vmatprep.subr.bf16.mxu0 0
    %901 = vmatpush1.bf16.msra.mxu0 %v867
    %902 = vmatprep.subr.bf16.mxu0 0
    %903 = vmatpush1.bf16.msra.mxu0 %v868
    %904 = vmatprep.subr.bf16.mxu0 0
    %905 = vmatpush1.bf16.msra.mxu0 %v869
    %906 = vmatprep.subr.bf16.mxu0 0
    %907 = vmatpush1.bf16.msra.mxu0 %v870
    %908 = vmatprep.subr.bf16.mxu0 0
    %909 = vmatpush1.bf16.msra.mxu0 %v871
    %910 = vmatprep.subr.bf16.mxu0 0
    %911 = vmatpush1.bf16.msra.mxu0 %v872
    %912 = vmatprep.subr.bf16.mxu0 0
    %913 = vmatpush1.bf16.msra.mxu0 %v873
    %914 = vmatprep.subr.bf16.mxu0 0
    %915 = vmatpush1.bf16.msra.mxu0 %v874
    %916 = vmatprep.subr.bf16.mxu0 0
    %917 = vmatpush1.bf16.msra.mxu0 %v875
    %918 = vmatprep.subr.bf16.mxu0 0
    %919 = vmatpush1.bf16.msra.mxu0 %v876
    %920 = vmatprep.subr.bf16.mxu0 0
    %921 = vmatpush1.bf16.msra.mxu0 %v877
    %922 = vmatprep.subr.bf16.mxu0 0
    %923 = vmatpush1.bf16.msra.mxu0 %v878
    %924 = vmatprep.subr.bf16.mxu0 0
    %925 = vmatpush1.bf16.msra.mxu0 %v879
    %926 = vmatprep.subr.bf16.mxu0 0
    %927 = vmatpush1.bf16.msra.mxu0 %v880
    %928 = vmatprep.subr.bf16.mxu0 0
    %929 = vmatpush1.bf16.msra.mxu0 %v881
    %930 = vmatprep.mubr.bf16.mxu0 %v787
    %931 = vmatmul.mubr.bf16.gmra.mrb[0].mxu0 %v786
    %v932 = vpop.f32.mrb[0].mxu0
    %v933 = vadd.f32 0.0, %v932
    %v934 = vpop.f32.mrb[0].mxu0
    %v935 = vpop.f32.mrb[0].mxu0
    %v936 = vadd.f32 0.0, %v935
    %v937 = vpop.f32.mrb[0].mxu0
    %938 = vmatprep.mubr.bf16.mxu0 %v789
    %939 = vmatmul.mubr.bf16.gmra.mrb[0].mxu0 %v788
    %v940 = vpop.f32.mrb[0].mxu0
    %v941 = vadd.f32 0.0, %v940
    %v942 = vpop.f32.mrb[0].mxu0
    %v943 = vpop.f32.mrb[0].mxu0
    %v944 = vadd.f32 0.0, %v943
    %v945 = vpop.f32.mrb[0].mxu0
    %946 = vmatprep.mubr.bf16.mxu0 %v791
    %947 = vmatmul.mubr.bf16.gmra.mrb[0].mxu0 %v790
    %v948 = vpop.f32.mrb[0].mxu0
    %v949 = vadd.f32 0.0, %v948
    %v950 = vpop.f32.mrb[0].mxu0
    %v951 = vpop.f32.mrb[0].mxu0
    %v952 = vadd.f32 0.0, %v951
    %v953 = vpop.f32.mrb[0].mxu0
    %954 = vmatprep.mubr.bf16.mxu0 %v793
    %955 = vmatmul.mubr.bf16.gmra.mrb[0].mxu0 %v792
    %v956 = vpop.f32.mrb[0].mxu0
    %v957 = vadd.f32 0.0, %v956
    %v958 = vpop.f32.mrb[0].mxu0
    %v959 = vpop.f32.mrb[0].mxu0
    %v960 = vadd.f32 0.0, %v959
    %v961 = vpop.f32.mrb[0].mxu0
    %962 = vmatprep.mubr.bf16.mxu0 %v795
    %963 = vmatmul.mubr.bf16.gmra.mrb[0].mxu0 %v794
    %v964 = vpop.f32.mrb[0].mxu0
    %v965 = vadd.f32 0.0, %v964
    %v966 = vpop.f32.mrb[0].mxu0
    %v967 = vpop.f32.mrb[0].mxu0
    %v968 = vadd.f32 0.0, %v967
    %v969 = vpop.f32.mrb[0].mxu0
    %970 = vmatprep.mubr.bf16.mxu0 %v797
    %971 = vmatmul.mubr.bf16.gmra.mrb[0].mxu0 %v796
    %v972 = vpop.f32.mrb[0].mxu0
    %v973 = vadd.f32 0.0, %v972
    %v974 = vpop.f32.mrb[0].mxu0
    %v975 = vpop.f32.mrb[0].mxu0
    %v976 = vadd.f32 0.0, %v975
    %v977 = vpop.f32.mrb[0].mxu0
    %978 = vmatprep.mubr.bf16.mxu0 %v799
    %979 = vmatmul.mubr.bf16.gmra.mrb[0].mxu0 %v798
    %v980 = vpop.f32.mrb[0].mxu0
    %v981 = vadd.f32 0.0, %v980
    %v982 = vpop.f32.mrb[0].mxu0
    %v983 = vpop.f32.mrb[0].mxu0
    %v984 = vadd.f32 0.0, %v983
    %v985 = vpop.f32.mrb[0].mxu0
    %986 = vmatprep.mubr.bf16.mxu0 %v801
    %987 = vmatmul.mubr.bf16.gmra.mrb[0].mxu0 %v800
    %v988 = vpop.f32.mrb[0].mxu0
    %v989 = vadd.f32 0.0, %v988
    %v990 = vpop.f32.mrb[0].mxu0
    %v991 = vpop.f32.mrb[0].mxu0
    %v992 = vadd.f32 0.0, %v991
    %v993 = vpop.f32.mrb[0].mxu0
    %994 = vdwg.mxu0
    %995 = vst [vmem:[#allocation2] sm:$0xff] %v933
    %996 = vst [vmem:[#allocation2 + $0x8] sm:$0xff] %v936
    %997 = vst [vmem:[#allocation2 + $0x10] sm:$0xff] %v941
    %998 = vst [vmem:[#allocation2 + $0x18] sm:$0xff] %v944
    %999 = vst [vmem:[#allocation2 + $0x20] sm:$0xff] %v949
    %1000 = vst [vmem:[#allocation2 + $0x28] sm:$0xff] %v952
    %1001 = vst [vmem:[#allocation2 + $0x30] sm:$0xff] %v957
    %1002 = vst [vmem:[#allocation2 + $0x38] sm:$0xff] %v960
    %1003 = vst [vmem:[#allocation2 + $0x40] sm:$0xff] %v965
    %1004 = vst [vmem:[#allocation2 + $0x48] sm:$0xff] %v968
    %1005 = vst [vmem:[#allocation2 + $0x50] sm:$0xff] %v973
    %1006 = vst [vmem:[#allocation2 + $0x58] sm:$0xff] %v976
    %1007 = vst [vmem:[#allocation2 + $0x60] sm:$0xff] %v981
    %1008 = vst [vmem:[#allocation2 + $0x68] sm:$0xff] %v984
    %1009 = vst [vmem:[#allocation2 + $0x70] sm:$0xff] %v989
    %1010 = vst [vmem:[#allocation2 + $0x78] sm:$0xff] %v992
    // Predicated region
    $region14: #{tp_sequence_parallel_mlp.1} parent=1 // pred_check
      _
    $region15: #{tp_sequence_parallel_mlp.1} parent=1 // pred_check_branch
      %1012 = sbr.rel (0) target = $region17
    $region16: #{tp_sequence_parallel_mlp.1} parent=1 // pred_region
      %s1014 = ssub.s32 2048, 2048
      %1015 = vsyncadd [#allocation3], %s1014
      %s1016 = sshll.u32 [#allocation2], 4
      %s1017 = int_to_ptr.vmem [resolvable:$true] %s1016
      %1022 = dma.vmem_to_hbm [thread:$0]  %s1017, 2048, %s3, [#allocation3], 128, 128, 8
    $region17: #{tp_sequence_parallel_mlp.1} parent=1 // pred_fallthru
      _
    // Predicated region
    $region18: #{tp_sequence_parallel_mlp.1} parent=1 // pred_check
      _
    $region19: #{tp_sequence_parallel_mlp.1} parent=1 // pred_check_branch
      %1024 = sbr.rel (0) target = $region21
    $region20: #{tp_sequence_parallel_mlp.1} parent=1 // pred_region
      %1025 = dma.done [#allocation3], 2048
    $region21: #{tp_sequence_parallel_mlp.1} parent=1 // pred_fallthru
      _
    %1026 = vsyncpa [#allocation3], 1

</llo_original>
